<compile_context>
chip_gen: v5e
topology: v5e:2x2
jax: 0.10.0
libtpu: 0.0.40
codegen_flags: <defaults>
</compile_context>

<pallas_src>
import functools
import math

import jax
import jax.numpy as jnp
from jax import lax
from jax.experimental import pallas as pl
from jax.experimental.pallas import tpu as pltpu

PAD = 0


# --------------------------------------------------------------------------
# Kernel: one grid step = one (direction, L-chunk). Time loop is in-kernel.
# --------------------------------------------------------------------------
def _bigru_kernel(x_ref, m_ref, wx_ref, bx_ref, whzr_ref, whh_ref, o_ref,
                  h_scr, gx_scr, m_scr, *, unroll):
    # x_ref : (chunk*B, E)   time-major rows of this chunk
    # m_ref : (chunk*B, 1)   mask rows
    # wx_ref: (E, 3H) = [Wxz|Wxr|Wxh]   bx_ref: (1, 3H) = [bz|br|bc]
    # whzr  : (H, 2H) = [Whz|Whr]       whh   : (H, H)
    # o_ref : (chunk, B, H)  hidden states, original time order
    # h_scr : (B, H) f32     carry across chunks;  gx_scr/m_scr: per-chunk slabs
    d = pl.program_id(0)              # 0 = forward, 1 = backward
    c = pl.program_id(1)              # chunk index along this direction's walk
    CH, B, H = o_ref.shape

    # h0 = zeros at the first chunk of each direction (module default).
    @pl.when(c == 0)
    def _():
        h_scr[...] = jnp.zeros_like(h_scr)

    # Hoisted x-side gates for the whole chunk: ONE MXU push, kept in VMEM.
    gx_scr[...] = (
        jnp.dot(x_ref[...], wx_ref[...], preferred_element_type=jnp.float32)
        + bx_ref[...].astype(jnp.float32))

    # Mask lane-broadcast hoisted out of the time loop (once per chunk).
    m_scr[...] = jnp.broadcast_to(m_ref[...].astype(jnp.float32), m_scr.shape)

    whzr = whzr_ref[...]
    whh = whh_ref[...]

    def step(t, h_prev):
        # Local time index within the chunk; backward walks it in reverse.
        lt = t + d * (CH - 1 - 2 * t)
        row = pl.multiple_of(lt * B, B)
        gxt = gx_scr[pl.ds(row, B), :]          # (B, 3H)
        m = m_scr[pl.ds(row, B), :]             # (B, H) pre-broadcast mask

        # Fused z|r gate matmul: one (B,H) @ (H,2H) MXU push on the h-chain.
        hzr = jnp.dot(h_prev.astype(whzr.dtype), whzr,
                      preferred_element_type=jnp.float32)
        zr = jax.nn.sigmoid(gxt[:, :2 * H] + hzr)
        z = zr[:, :H]
        r = zr[:, H:]
        h_tilde = jnp.tanh(
            gxt[:, 2 * H:]
            + jnp.dot((r * h_prev).astype(whh.dtype), whh,
                      preferred_element_type=jnp.float32))

        # h' = (1-z)h + z h~ then mask blend, folded exactly into one FMA chain.
        h_new = h_prev + (m * z) * (h_tilde - h_prev)
        o_ref[lt] = h_new.astype(o_ref.dtype)
        return h_new                              # carry stays in registers

    # Bounded unroll; h spills to scratch only at the chunk boundary.
    h_scr[...] = lax.fori_loop(0, CH, step, h_scr[...], unroll=unroll)


# --------------------------------------------------------------------------
# Chunk sizing from an explicit VMEM budget.
# --------------------------------------------------------------------------
def _vmem_need(chunk, B, E, H, itemsize=4):
    it = max(int(itemsize), 4)
    blocks = 2 * chunk * B * (E + 1 + H) * it                 # x, mask, out (x2 buffered)
    weights = 2 * (E * 3 * H + 3 * H + H * 2 * H + H * H) * it
    scratch = (B * H + chunk * B * (3 * H + H)) * 4           # h, gx, m slabs (f32)
    return blocks + weights + scratch


def _choose_chunk(L, B, E, H, itemsize=4, budget=20 << 20):
    ch = min(L, 256)
    while ch > 1 and _vmem_need(ch, B, E, H, itemsize) > budget:
        ch = max(1, ch // 2)
    return ch


# --------------------------------------------------------------------------
# Wrapper: bidirectional GRU over the full sequence.
# --------------------------------------------------------------------------
def bigru(xs_e, mask, wx, bx, whzr, whh, *, chunk_l=None, unroll=4):
    L, B, E = xs_e.shape
    H = whh.shape[-1]
    H3 = 3 * H

    chunk = min(int(chunk_l), L) if chunk_l else _choose_chunk(
        L, B, E, H, xs_e.dtype.itemsize)
    # (8,128) tiling: the (chunk*B, E) block's sublane dim must be 8-aligned.
    g = 8 // math.gcd(B, 8)
    chunk = ((chunk + g - 1) // g) * g
    nc = pl.cdiv(L, chunk)
    Lp = nc * chunk

    if Lp != L:
        # Padded tail rows carry mask == 0  ->  h passes through unchanged
        # (exactly), so the backward direction (which visits the tail first)
        # stays correct.  Padded outputs are sliced off below.
        pad = Lp - L
        xs_e = jnp.concatenate(
            [xs_e, jnp.zeros((pad, B, E), xs_e.dtype)], axis=0)
        mask = jnp.concatenate(
            [mask, jnp.zeros((pad, B, 1), mask.dtype)], axis=0)

    x2d = xs_e.reshape(Lp * B, E)     # time-major rows; contiguous (free)
    m2d = mask.reshape(Lp * B, 1)

    def rev(d, c):                    # chunk index for direction d (1 = reversed)
        return c + d * (nc - 1 - 2 * c)

    est = _vmem_need(chunk, B, E, H, xs_e.dtype.itemsize)
    vmem_limit = int(min(max(2 * est, 32 << 20), 64 << 20))

    kern = functools.partial(
        _bigru_kernel, unroll=int(max(1, min(unroll, chunk))))

    h_all = pl.pallas_call(
        kern,
        out_shape=jax.ShapeDtypeStruct((2, Lp, B, H), jnp.float32),
        grid_spec=pltpu.PrefetchScalarGridSpec(
            num_scalar_prefetch=0,
            grid=(2, nc),
            in_specs=[
                pl.BlockSpec((chunk * B, E), lambda d, c: (rev(d, c), 0)),
                pl.BlockSpec((chunk * B, 1), lambda d, c: (rev(d, c), 0)),
                pl.BlockSpec((None, E, H3), lambda d, c: (d, 0, 0)),
                pl.BlockSpec((None, 1, H3), lambda d, c: (d, 0, 0)),
                pl.BlockSpec((None, H, 2 * H), lambda d, c: (d, 0, 0)),
                pl.BlockSpec((None, H, H), lambda d, c: (d, 0, 0)),
            ],
            out_specs=pl.BlockSpec((None, chunk, B, H),
                                   lambda d, c: (d, rev(d, c), 0, 0)),
            scratch_shapes=[
                pltpu.VMEM((B, H), jnp.float32),           # h carry
                pltpu.VMEM((chunk * B, H3), jnp.float32),  # hoisted x-gates
                pltpu.VMEM((chunk * B, H), jnp.float32),   # pre-broadcast mask
            ],
        ),
        compiler_params=pltpu.CompilerParams(
            dimension_semantics=("parallel", "arbitrary"),
            vmem_limit_bytes=vmem_limit),
    )(x2d, m2d, wx, bx, whzr, whh)

    return h_all[:, :L] if Lp != L else h_all


# --------------------------------------------------------------------------
# Parameters (shapes from Encoder.__init__), weights pre-fused per direction:
#   wx (2, E, 3H) = [Wxz|Wxr|Wxh],  bx (2, 1, 3H) = [bz|br|bc]
#   whzr (2, H, 2H) = [Whz|Whr],    whh (2, H, H)
# --------------------------------------------------------------------------
def init_params(key, src_vocab_size, input_size, output_size):
    E, H, V = input_size, output_size, src_vocab_size
    keys = jax.random.split(key, 16)
    scale = 0.1

    def w(k, shape):
        return (scale * jax.random.normal(k, shape)).astype(jnp.float32)

    emb = w(keys[0], (V, E)).at[PAD].set(0.0)   # padding_idx=PAD -> zero row

    def gru_params(base):
        wxz, whz = w(keys[base + 0], (E, H)), w(keys[base + 1], (H, H))
        wxr, whr = w(keys[base + 2], (E, H)), w(keys[base + 3], (H, H))
        wxh, whh = w(keys[base + 4], (E, H)), w(keys[base + 5], (H, H))
        bz = w(keys[base + 6], (1, H))
        br = bz * 0.5
        bc = bz * 0.25
        return dict(
            wx=jnp.concatenate([wxz, wxr, wxh], axis=1),
            bx=jnp.concatenate([bz, br, bc], axis=1),
            whzr=jnp.concatenate([whz, whr], axis=1),
            whh=whh,
        )

    forw = gru_params(1)
    back = gru_params(8)
    return dict(
        emb=emb,
        wx=jnp.stack([forw["wx"], back["wx"]], axis=0),
        bx=jnp.stack([forw["bx"], back["bx"]], axis=0),
        whzr=jnp.stack([forw["whzr"], back["whzr"]], axis=0),
        whh=jnp.stack([forw["whh"], back["whh"]], axis=0),
    )


@functools.partial(jax.jit, static_argnames=("chunk_l",))
def encoder_forward(params, xs, xs_mask, chunk_l=None):
    """Equivalent of Encoder.forward(xs, xs_mask) with h0 = zeros."""
    L, B = xs.shape
    xs_e = jnp.take(params["emb"], xs, axis=0)          # embedding gather (XLA)
    mask3 = xs_mask.reshape(L, B, 1).astype(jnp.float32)
    h_all = bigru(xs_e, mask3, params["wx"], params["bx"],
                  params["whzr"], params["whh"], chunk_l=chunk_l)
    right, left = h_all[0], h_all[1]
    # TODO(synk): with H % 128 == 0, write directly into the fused (L,B,2H)
    # layout from the kernel and drop this concatenate.
    r1 = jnp.concatenate([right, left], axis=-1)
    r2 = left[0]
    return r1, r2


# --------------------------------------------------------------------------
# Pure-JAX reference (mirrors the PyTorch loops) for correctness checks.
# --------------------------------------------------------------------------
def encoder_reference(params, xs, xs_mask):
    xs_e = params["emb"][xs]
    L, B, _ = xs_e.shape
    H = params["whh"].shape[-1]

    def direction(d, time_order):
        wx, bx = params["wx"][d], params["bx"][d]
        whzr, whh = params["whzr"][d], params["whh"][d]
        wxz, wxr, wxh = wx[:, :H], wx[:, H:2 * H], wx[:, 2 * H:]
        bz, br, bc = bx[:, :H], bx[:, H:2 * H], bx[:, 2 * H:]
        whz, whr = whzr[:, :H], whzr[:, H:]
        h = jnp.zeros((B, H), jnp.float32)
        outs = [None] * L
        for k in time_order:
            x = xs_e[k]
            m = xs_mask[k][:, None]
            z = jax.nn.sigmoid(x @ wxz + h @ whz + bz)
            r = jax.nn.sigmoid(x @ wxr + h @ whr + br)
            hti = jnp.tanh(x @ wxh + (r * h) @ whh + bc)
            h_new = (1.0 - z) * h + z * hti
            h = m * h_new + (1.0 - m) * h
            outs[k] = h
        return jnp.stack(outs, axis=0)

    right = direction(0, range(L))
    left = direction(1, reversed(range(L)))
    return jnp.concatenate([right, left], axis=-1), left[0]


if __name__ == "__main__":
    src_vocab_size = 20
    input_size = 16    # E (src_wemb_size)
    output_size = 32   # H

    key = jax.random.PRNGKey(0)
    k_param, k_tok1, k_tok2 = jax.random.split(key, 3)
    params = init_params(k_param, src_vocab_size, input_size, output_size)

    # -- Config 1: odd L + explicit small time-chunks -> exercises the L-chunk
    #    grid axis, the padded (mask==0) tail and the reversed chunk walk.
    L1, B1 = 9, 4
    xs1 = jax.random.randint(k_tok1, (L1, B1), 1, src_vocab_size, dtype=jnp.int32)
    xs1 = xs1.at[-2:, :2].set(PAD)                 # some padding tokens
    m1 = (xs1 != PAD).astype(jnp.float32)
    r1, r2 = encoder_forward(params, xs1, m1, chunk_l=4)
    jax.block_until_ready((r1, r2))
    assert r1.shape == (L1, B1, 2 * output_size), r1.shape
    assert r2.shape == (B1, output_size), r2.shape
    assert jnp.all(jnp.isfinite(r1)) and jnp.all(jnp.isfinite(r2))
    r1_ref, r2_ref = encoder_reference(params, xs1, m1)
    assert jnp.allclose(r1, r1_ref, atol=2e-3, rtol=0), float(
        jnp.max(jnp.abs(r1 - r1_ref)))
    assert jnp.allclose(r2, r2_ref, atol=2e-3, rtol=0), float(
        jnp.max(jnp.abs(r2 - r2_ref)))

    # -- Config 2: auto chunking (single chunk), different batch size.
    L2, B2 = 8, 8
    xs2 = jax.random.randint(k_tok2, (L2, B2), 1, src_vocab_size, dtype=jnp.int32)
    xs2 = xs2.at[-1:, :].set(PAD)
    m2 = (xs2 != PAD).astype(jnp.float32)
    r1b, r2b = encoder_forward(params, xs2, m2)
    jax.block_until_ready((r1b, r2b))
    r1b_ref, r2b_ref = encoder_reference(params, xs2, m2)
    assert jnp.allclose(r1b, r1b_ref, atol=2e-3, rtol=0), float(
        jnp.max(jnp.abs(r1b - r1b_ref)))
    assert jnp.allclose(r2b, r2b_ref, atol=2e-3, rtol=0), float(
        jnp.max(jnp.abs(r2b - r2b_ref)))

    print("KERNEL_OK")
</pallas_src>

<mosaic_0001>
module attributes {stable_mosaic.version = 11 : i64} {
  func.func @_bigru_kernel(%arg0: i32, %arg1: i32, %arg2: memref<16x16xf32, #tpu.memory_space<vmem>>, %arg3: memref<16x1xf32, #tpu.memory_space<vmem>>, %arg4: memref<1x16x96xf32, #tpu.memory_space<vmem>>, %arg5: memref<1x1x96xf32, #tpu.memory_space<vmem>>, %arg6: memref<1x32x64xf32, #tpu.memory_space<vmem>>, %arg7: memref<1x32x32xf32, #tpu.memory_space<vmem>>, %arg8: memref<1x4x4x32xf32, #tpu.memory_space<vmem>>, %arg9: memref<4x32xf32, #tpu.memory_space<vmem>>, %arg10: memref<16x96xf32, #tpu.memory_space<vmem>>, %arg11: memref<16x32xf32, #tpu.memory_space<vmem>>) attributes {dimension_semantics = [#tpu.dimension_semantics<parallel>, #tpu.dimension_semantics<arbitrary>], iteration_bounds = array<i64: 2, 3>, scalar_prefetch = 0 : i64, scratch_operands = 3 : i64, tpu.core_type = #tpu.core_type<tc>, window_params = [{transform_indices = @transform_0, window_bounds = array<i64: 16, 16>}, {transform_indices = @transform_1, window_bounds = array<i64: 16, 1>}, {transform_indices = @transform_2, window_bounds = array<i64: 1, 16, 96>}, {transform_indices = @transform_3, window_bounds = array<i64: 1, 1, 96>}, {transform_indices = @transform_4, window_bounds = array<i64: 1, 32, 64>}, {transform_indices = @transform_5, window_bounds = array<i64: 1, 32, 32>}, {transform_indices = @transform_6, window_bounds = array<i64: 1, 4, 4, 32>}]} {
    %c0_i32 = arith.constant 0 : i32
    %0 = arith.cmpi eq, %arg1, %c0_i32 : i32
    %1 = arith.extui %0 : i1 to i32
    %c0_i32_0 = arith.constant 0 : i32
    %2 = arith.cmpi ne, %1, %c0_i32_0 : i32
    scf.if %2 {
      %cst_69 = arith.constant 0.000000e+00 : f32
      %154 = vector.broadcast %cst_69 : f32 to vector<4x32xf32>
      %c0_70 = arith.constant 0 : index
      %c0_71 = arith.constant 0 : index
      %155 = vector.load %arg9[%c0_70, %c0_71] : memref<4x32xf32, #tpu.memory_space<vmem>>, vector<4x32xf32>
      tpu.vector_store %arg9[%c0_70, %c0_71], %154 {strides = array<i32>} : memref<4x32xf32, #tpu.memory_space<vmem>>, vector<4x32xf32>,
    } else {
    }
    %c0 = arith.constant 0 : index
    %c0_1 = arith.constant 0 : index
    %3 = vector.load %arg2[%c0, %c0_1] : memref<16x16xf32, #tpu.memory_space<vmem>>, vector<16x16xf32>
    %c0_2 = arith.constant 0 : index
    %c0_3 = arith.constant 0 : index
    %c0_4 = arith.constant 0 : index
    %4 = vector.load %arg4[%c0_2, %c0_3, %c0_4] : memref<1x16x96xf32, #tpu.memory_space<vmem>>, vector<1x16x96xf32>
    %5 = vector.shape_cast %4 : vector<1x16x96xf32> to vector<16x96xf32>
    %cst = arith.constant dense<0.000000e+00> : vector<16x96xf32>
    %6 = tpu.matmul %3, %5, %cst {dimension_numbers = #tpu.dot_dimension_numbers<[1], [0], [0], [1], [0, 0, 1, 1], [], []>} : vector<16x16xf32>, vector<16x96xf32>, vector<16x96xf32> -> vector<16x96xf32>
    %c0_5 = arith.constant 0 : index
    %c0_6 = arith.constant 0 : index
    %c0_7 = arith.constant 0 : index
    %7 = vector.load %arg5[%c0_5, %c0_6, %c0_7] : memref<1x1x96xf32, #tpu.memory_space<vmem>>, vector<1x1x96xf32>
    %8 = vector.shape_cast %7 : vector<1x1x96xf32> to vector<1x96xf32>
    %9 = vector.broadcast %8 : vector<1x96xf32> to vector<16x96xf32>
    %10 = arith.addf %6, %9 : vector<16x96xf32>
    %c0_8 = arith.constant 0 : index
    %c0_9 = arith.constant 0 : index
    %11 = vector.load %arg10[%c0_8, %c0_9] : memref<16x96xf32, #tpu.memory_space<vmem>>, vector<16x96xf32>
    tpu.vector_store %arg10[%c0_8, %c0_9], %10 {strides = array<i32>} : memref<16x96xf32, #tpu.memory_space<vmem>>, vector<16x96xf32>,
    %c0_10 = arith.constant 0 : index
    %c0_11 = arith.constant 0 : index
    %12 = vector.load %arg3[%c0_10, %c0_11] : memref<16x1xf32, #tpu.memory_space<vmem>>, vector<16x1xf32>
    %13 = vector.shape_cast %12 : vector<16x1xf32> to vector<16x1xf32>
    %14 = vector.broadcast %13 : vector<16x1xf32> to vector<16x32xf32>
    %c0_12 = arith.constant 0 : index
    %c0_13 = arith.constant 0 : index
    %15 = vector.load %arg11[%c0_12, %c0_13] : memref<16x32xf32, #tpu.memory_space<vmem>>, vector<16x32xf32>
    tpu.vector_store %arg11[%c0_12, %c0_13], %14 {strides = array<i32>} : memref<16x32xf32, #tpu.memory_space<vmem>>, vector<16x32xf32>,
    %c0_14 = arith.constant 0 : index
    %c0_15 = arith.constant 0 : index
    %c0_16 = arith.constant 0 : index
    %16 = vector.load %arg6[%c0_14, %c0_15, %c0_16] : memref<1x32x64xf32, #tpu.memory_space<vmem>>, vector<1x32x64xf32>
    %17 = vector.shape_cast %16 : vector<1x32x64xf32> to vector<32x64xf32>
    %c0_17 = arith.constant 0 : index
    %c0_18 = arith.constant 0 : index
    %c0_19 = arith.constant 0 : index
    %18 = vector.load %arg7[%c0_17, %c0_18, %c0_19] : memref<1x32x32xf32, #tpu.memory_space<vmem>>, vector<1x32x32xf32>
    %19 = vector.shape_cast %18 : vector<1x32x32xf32> to vector<32x32xf32>
    %c0_20 = arith.constant 0 : index
    %c0_21 = arith.constant 0 : index
    %20 = vector.load %arg9[%c0_20, %c0_21] : memref<4x32xf32, #tpu.memory_space<vmem>>, vector<4x32xf32>
    %c0_i32_22 = arith.constant 0 : i32
    %c2_i32 = arith.constant 2 : i32
    %21 = arith.muli %c2_i32, %c0_i32_22 : i32
    %c3_i32 = arith.constant 3 : i32
    %22 = arith.subi %c3_i32, %21 : i32
    %23 = arith.muli %arg0, %22 : i32
    %24 = arith.addi %c0_i32_22, %23 : i32
    %c4_i32 = arith.constant 4 : i32
    %25 = arith.muli %24, %c4_i32 : i32
    %26 = tpu.assume_multiple %25, 4 : i32
    %27 = arith.index_cast %26 : i32 to index
    %c0_23 = arith.constant 0 : index
    %28 = vector.load %arg10[%27, %c0_23] : memref<16x96xf32, #tpu.memory_space<vmem>>, vector<4x96xf32>
    %29 = arith.index_cast %26 : i32 to index
    %c0_24 = arith.constant 0 : index
    %30 = vector.load %arg11[%29, %c0_24] : memref<16x32xf32, #tpu.memory_space<vmem>>, vector<4x32xf32>
    %cst_25 = arith.constant dense<0.000000e+00> : vector<4x64xf32>
    %31 = tpu.matmul %20, %17, %cst_25 {dimension_numbers = #tpu.dot_dimension_numbers<[1], [0], [0], [1], [0, 0, 1, 1], [], []>} : vector<4x32xf32>, vector<32x64xf32>, vector<4x64xf32> -> vector<4x64xf32>
    %32 = vector.extract_strided_slice %28 {offsets = [0, 0], sizes = [4, 64], strides = [1, 1]} : vector<4x96xf32> to vector<4x64xf32>
    %33 = arith.addf %32, %31 : vector<4x64xf32>
    %34 = arith.negf %33 : vector<4x64xf32>
    %35 = math.exp %34 : vector<4x64xf32>
    %cst_26 = arith.constant 1.000000e+00 : f32
    %36 = vector.broadcast %cst_26 : f32 to vector<4x64xf32>
    %37 = arith.addf %36, %35 : vector<4x64xf32>
    %38 = arith.divf %36, %37 : vector<4x64xf32>
    %39 = vector.extract_strided_slice %38 {offsets = [0, 0], sizes = [4, 32], strides = [1, 1]} : vector<4x64xf32> to vector<4x32xf32>
    %40 = vector.extract_strided_slice %38 {offsets = [0, 32], sizes = [4, 32], strides = [1, 1]} : vector<4x64xf32> to vector<4x32xf32>
    %41 = vector.extract_strided_slice %28 {offsets = [0, 64], sizes = [4, 32], strides = [1, 1]} : vector<4x96xf32> to vector<4x32xf32>
    %42 = arith.mulf %40, %20 : vector<4x32xf32>
    %cst_27 = arith.constant dense<0.000000e+00> : vector<4x32xf32>
    %43 = tpu.matmul %42, %19, %cst_27 {dimension_numbers = #tpu.dot_dimension_numbers<[1], [0], [0], [1], [0, 0, 1, 1], [], []>} : vector<4x32xf32>, vector<32x32xf32>, vector<4x32xf32> -> vector<4x32xf32>
    %44 = arith.addf %41, %43 : vector<4x32xf32>
    %45 = math.tanh %44 : vector<4x32xf32>
    %46 = arith.mulf %30, %39 : vector<4x32xf32>
    %47 = arith.subf %45, %20 : vector<4x32xf32>
    %48 = arith.mulf %46, %47 : vector<4x32xf32>
    %49 = arith.addf %20, %48 : vector<4x32xf32>
    %c0_28 = arith.constant 0 : index
    %50 = arith.index_cast %24 : i32 to index
    %c0_29 = arith.constant 0 : index
    %c0_30 = arith.constant 0 : index
    %51 = vector.load %arg8[%c0_28, %50, %c0_29, %c0_30] : memref<1x4x4x32xf32, #tpu.memory_space<vmem>>, vector<1x1x4x32xf32>
    %52 = vector.shape_cast %51 : vector<1x1x4x32xf32> to vector<4x32xf32>
    %53 = vector.shape_cast %49 : vector<4x32xf32> to vector<1x1x4x32xf32>
    tpu.vector_store %arg8[%c0_28, %50, %c0_29, %c0_30], %53 {strides = array<i32>} : memref<1x4x4x32xf32, #tpu.memory_space<vmem>>, vector<1x1x4x32xf32>,
    %c1_i32 = arith.constant 1 : i32
    %c2_i32_31 = arith.constant 2 : i32
    %54 = arith.muli %c2_i32_31, %c1_i32 : i32
    %c3_i32_32 = arith.constant 3 : i32
    %55 = arith.subi %c3_i32_32, %54 : i32
    %56 = arith.muli %arg0, %55 : i32
    %57 = arith.addi %c1_i32, %56 : i32
    %c4_i32_33 = arith.constant 4 : i32
    %58 = arith.muli %57, %c4_i32_33 : i32
    %59 = tpu.assume_multiple %58, 4 : i32
    %60 = arith.index_cast %59 : i32 to index
    %c0_34 = arith.constant 0 : index
    %61 = vector.load %arg10[%60, %c0_34] : memref<16x96xf32, #tpu.memory_space<vmem>>, vector<4x96xf32>
    %62 = arith.index_cast %59 : i32 to index
    %c0_35 = arith.constant 0 : index
    %63 = vector.load %arg11[%62, %c0_35] : memref<16x32xf32, #tpu.memory_space<vmem>>, vector<4x32xf32>
    %cst_36 = arith.constant dense<0.000000e+00> : vector<4x64xf32>
    %64 = tpu.matmul %49, %17, %cst_36 {dimension_numbers = #tpu.dot_dimension_numbers<[1], [0], [0], [1], [0, 0, 1, 1], [], []>} : vector<4x32xf32>, vector<32x64xf32>, vector<4x64xf32> -> vector<4x64xf32>
    %65 = vector.extract_strided_slice %61 {offsets = [0, 0], sizes = [4, 64], strides = [1, 1]} : vector<4x96xf32> to vector<4x64xf32>
    %66 = arith.addf %65, %64 : vector<4x64xf32>
    %67 = arith.negf %66 : vector<4x64xf32>
    %68 = math.exp %67 : vector<4x64xf32>
    %cst_37 = arith.constant 1.000000e+00 : f32
    %69 = vector.broadcast %cst_37 : f32 to vector<4x64xf32>
    %70 = arith.addf %69, %68 : vector<4x64xf32>
    %71 = arith.divf %69, %70 : vector<4x64xf32>
    %72 = vector.extract_strided_slice %71 {offsets = [0, 0], sizes = [4, 32], strides = [1, 1]} : vector<4x64xf32> to vector<4x32xf32>
    %73 = vector.extract_strided_slice %71 {offsets = [0, 32], sizes = [4, 32], strides = [1, 1]} : vector<4x64xf32> to vector<4x32xf32>
    %74 = vector.extract_strided_slice %61 {offsets = [0, 64], sizes = [4, 32], strides = [1, 1]} : vector<4x96xf32> to vector<4x32xf32>
    %75 = arith.mulf %73, %49 : vector<4x32xf32>
    %cst_38 = arith.constant dense<0.000000e+00> : vector<4x32xf32>
    %76 = tpu.matmul %75, %19, %cst_38 {dimension_numbers = #tpu.dot_dimension_numbers<[1], [0], [0], [1], [0, 0, 1, 1], [], []>} : vector<4x32xf32>, vector<32x32xf32>, vector<4x32xf32> -> vector<4x32xf32>
    %77 = arith.addf %74, %76 : vector<4x32xf32>
    %78 = math.tanh %77 : vector<4x32xf32>
    %79 = arith.mulf %63, %72 : vector<4x32xf32>
    %80 = arith.subf %78, %49 : vector<4x32xf32>
    %81 = arith.mulf %79, %80 : vector<4x32xf32>
    %82 = arith.addf %49, %81 : vector<4x32xf32>
    %c0_39 = arith.constant 0 : index
    %83 = arith.index_cast %57 : i32 to index
    %c0_40 = arith.constant 0 : index
    %c0_41 = arith.constant 0 : index
    %84 = vector.load %arg8[%c0_39, %83, %c0_40, %c0_41] : memref<1x4x4x32xf32, #tpu.memory_space<vmem>>, vector<1x1x4x32xf32>
    %85 = vector.shape_cast %84 : vector<1x1x4x32xf32> to vector<4x32xf32>
    %86 = vector.shape_cast %82 : vector<4x32xf32> to vector<1x1x4x32xf32>
    tpu.vector_store %arg8[%c0_39, %83, %c0_40, %c0_41], %86 {strides = array<i32>} : memref<1x4x4x32xf32, #tpu.memory_space<vmem>>, vector<1x1x4x32xf32>,
    %c2_i32_42 = arith.constant 2 : i32
    %c2_i32_43 = arith.constant 2 : i32
    %87 = arith.muli %c2_i32_43, %c2_i32_42 : i32
    %c3_i32_44 = arith.constant 3 : i32
    %88 = arith.subi %c3_i32_44, %87 : i32
    %89 = arith.muli %arg0, %88 : i32
    %90 = arith.addi %c2_i32_42, %89 : i32
    %c4_i32_45 = arith.constant 4 : i32
    %91 = arith.muli %90, %c4_i32_45 : i32
    %92 = tpu.assume_multiple %91, 4 : i32
    %93 = arith.index_cast %92 : i32 to index
    %c0_46 = arith.constant 0 : index
    %94 = vector.load %arg10[%93, %c0_46] : memref<16x96xf32, #tpu.memory_space<vmem>>, vector<4x96xf32>
    %95 = arith.index_cast %92 : i32 to index
    %c0_47 = arith.constant 0 : index
    %96 = vector.load %arg11[%95, %c0_47] : memref<16x32xf32, #tpu.memory_space<vmem>>, vector<4x32xf32>
    %cst_48 = arith.constant dense<0.000000e+00> : vector<4x64xf32>
    %97 = tpu.matmul %82, %17, %cst_48 {dimension_numbers = #tpu.dot_dimension_numbers<[1], [0], [0], [1], [0, 0, 1, 1], [], []>} : vector<4x32xf32>, vector<32x64xf32>, vector<4x64xf32> -> vector<4x64xf32>
    %98 = vector.extract_strided_slice %94 {offsets = [0, 0], sizes = [4, 64], strides = [1, 1]} : vector<4x96xf32> to vector<4x64xf32>
    %99 = arith.addf %98, %97 : vector<4x64xf32>
    %100 = arith.negf %99 : vector<4x64xf32>
    %101 = math.exp %100 : vector<4x64xf32>
    %cst_49 = arith.constant 1.000000e+00 : f32
    %102 = vector.broadcast %cst_49 : f32 to vector<4x64xf32>
    %103 = arith.addf %102, %101 : vector<4x64xf32>
    %104 = arith.divf %102, %103 : vector<4x64xf32>
    %105 = vector.extract_strided_slice %104 {offsets = [0, 0], sizes = [4, 32], strides = [1, 1]} : vector<4x64xf32> to vector<4x32xf32>
    %106 = vector.extract_strided_slice %104 {offsets = [0, 32], sizes = [4, 32], strides = [1, 1]} : vector<4x64xf32> to vector<4x32xf32>
    %107 = vector.extract_strided_slice %94 {offsets = [0, 64], sizes = [4, 32], strides = [1, 1]} : vector<4x96xf32> to vector<4x32xf32>
    %108 = arith.mulf %106, %82 : vector<4x32xf32>
    %cst_50 = arith.constant dense<0.000000e+00> : vector<4x32xf32>
    %109 = tpu.matmul %108, %19, %cst_50 {dimension_numbers = #tpu.dot_dimension_numbers<[1], [0], [0], [1], [0, 0, 1, 1], [], []>} : vector<4x32xf32>, vector<32x32xf32>, vector<4x32xf32> -> vector<4x32xf32>
    %110 = arith.addf %107, %109 : vector<4x32xf32>
    %111 = math.tanh %110 : vector<4x32xf32>
    %112 = arith.mulf %96, %105 : vector<4x32xf32>
    %113 = arith.subf %111, %82 : vector<4x32xf32>
    %114 = arith.mulf %112, %113 : vector<4x32xf32>
    %115 = arith.addf %82, %114 : vector<4x32xf32>
    %c0_51 = arith.constant 0 : index
    %116 = arith.index_cast %90 : i32 to index
    %c0_52 = arith.constant 0 : index
    %c0_53 = arith.constant 0 : index
    %117 = vector.load %arg8[%c0_51, %116, %c0_52, %c0_53] : memref<1x4x4x32xf32, #tpu.memory_space<vmem>>, vector<1x1x4x32xf32>
    %118 = vector.shape_cast %117 : vector<1x1x4x32xf32> to vector<4x32xf32>
    %119 = vector.shape_cast %115 : vector<4x32xf32> to vector<1x1x4x32xf32>
    tpu.vector_store %arg8[%c0_51, %116, %c0_52, %c0_53], %119 {strides = array<i32>} : memref<1x4x4x32xf32, #tpu.memory_space<vmem>>, vector<1x1x4x32xf32>,
    %c3_i32_54 = arith.constant 3 : i32
    %c2_i32_55 = arith.constant 2 : i32
    %120 = arith.muli %c2_i32_55, %c3_i32_54 : i32
    %c3_i32_56 = arith.constant 3 : i32
    %121 = arith.subi %c3_i32_56, %120 : i32
    %122 = arith.muli %arg0, %121 : i32
    %123 = arith.addi %c3_i32_54, %122 : i32
    %c4_i32_57 = arith.constant 4 : i32
    %124 = arith.muli %123, %c4_i32_57 : i32
    %125 = tpu.assume_multiple %124, 4 : i32
    %126 = arith.index_cast %125 : i32 to index
    %c0_58 = arith.constant 0 : index
    %127 = vector.load %arg10[%126, %c0_58] : memref<16x96xf32, #tpu.memory_space<vmem>>, vector<4x96xf32>
    %128 = arith.index_cast %125 : i32 to index
    %c0_59 = arith.constant 0 : index
    %129 = vector.load %arg11[%128, %c0_59] : memref<16x32xf32, #tpu.memory_space<vmem>>, vector<4x32xf32>
    %cst_60 = arith.constant dense<0.000000e+00> : vector<4x64xf32>
    %130 = tpu.matmul %115, %17, %cst_60 {dimension_numbers = #tpu.dot_dimension_numbers<[1], [0], [0], [1], [0, 0, 1, 1], [], []>} : vector<4x32xf32>, vector<32x64xf32>, vector<4x64xf32> -> vector<4x64xf32>
    %131 = vector.extract_strided_slice %127 {offsets = [0, 0], sizes = [4, 64], strides = [1, 1]} : vector<4x96xf32> to vector<4x64xf32>
    %132 = arith.addf %131, %130 : vector<4x64xf32>
    %133 = arith.negf %132 : vector<4x64xf32>
    %134 = math.exp %133 : vector<4x64xf32>
    %cst_61 = arith.constant 1.000000e+00 : f32
    %135 = vector.broadcast %cst_61 : f32 to vector<4x64xf32>
    %136 = arith.addf %135, %134 : vector<4x64xf32>
    %137 = arith.divf %135, %136 : vector<4x64xf32>
    %138 = vector.extract_strided_slice %137 {offsets = [0, 0], sizes = [4, 32], strides = [1, 1]} : vector<4x64xf32> to vector<4x32xf32>
    %139 = vector.extract_strided_slice %137 {offsets = [0, 32], sizes = [4, 32], strides = [1, 1]} : vector<4x64xf32> to vector<4x32xf32>
    %140 = vector.extract_strided_slice %127 {offsets = [0, 64], sizes = [4, 32], strides = [1, 1]} : vector<4x96xf32> to vector<4x32xf32>
    %141 = arith.mulf %139, %115 : vector<4x32xf32>
    %cst_62 = arith.constant dense<0.000000e+00> : vector<4x32xf32>
    %142 = tpu.matmul %141, %19, %cst_62 {dimension_numbers = #tpu.dot_dimension_numbers<[1], [0], [0], [1], [0, 0, 1, 1], [], []>} : vector<4x32xf32>, vector<32x32xf32>, vector<4x32xf32> -> vector<4x32xf32>
    %143 = arith.addf %140, %142 : vector<4x32xf32>
    %144 = math.tanh %143 : vector<4x32xf32>
    %145 = arith.mulf %129, %138 : vector<4x32xf32>
    %146 = arith.subf %144, %115 : vector<4x32xf32>
    %147 = arith.mulf %145, %146 : vector<4x32xf32>
    %148 = arith.addf %115, %147 : vector<4x32xf32>
    %c0_63 = arith.constant 0 : index
    %149 = arith.index_cast %123 : i32 to index
    %c0_64 = arith.constant 0 : index
    %c0_65 = arith.constant 0 : index
    %150 = vector.load %arg8[%c0_63, %149, %c0_64, %c0_65] : memref<1x4x4x32xf32, #tpu.memory_space<vmem>>, vector<1x1x4x32xf32>
    %151 = vector.shape_cast %150 : vector<1x1x4x32xf32> to vector<4x32xf32>
    %152 = vector.shape_cast %148 : vector<4x32xf32> to vector<1x1x4x32xf32>
    tpu.vector_store %arg8[%c0_63, %149, %c0_64, %c0_65], %152 {strides = array<i32>} : memref<1x4x4x32xf32, #tpu.memory_space<vmem>>, vector<1x1x4x32xf32>,
    %c4_i32_66 = arith.constant 4 : i32
    %c0_67 = arith.constant 0 : index
    %c0_68 = arith.constant 0 : index
    %153 = vector.load %arg9[%c0_67, %c0_68] : memref<4x32xf32, #tpu.memory_space<vmem>>, vector<4x32xf32>
    tpu.vector_store %arg9[%c0_67, %c0_68], %148 {strides = array<i32>} : memref<4x32xf32, #tpu.memory_space<vmem>>, vector<4x32xf32>,
    return
  }
  func.func @transform_0(%arg0: i32, %arg1: i32) -> (i32, i32) {
    %c2_i32 = arith.constant 2 : i32
    %0 = arith.muli %c2_i32, %arg1 : i32
    %c2_i32_0 = arith.constant 2 : i32
    %1 = arith.subi %c2_i32_0, %0 : i32
    %2 = arith.muli %arg0, %1 : i32
    %3 = arith.addi %arg1, %2 : i32
    %c0_i32 = arith.constant 0 : i32
    %c0_i32_1 = arith.constant 0 : i32
    return %3, %c0_i32 : i32, i32
  }
  func.func @transform_1(%arg0: i32, %arg1: i32) -> (i32, i32) {
    %c2_i32 = arith.constant 2 : i32
    %0 = arith.muli %c2_i32, %arg1 : i32
    %c2_i32_0 = arith.constant 2 : i32
    %1 = arith.subi %c2_i32_0, %0 : i32
    %2 = arith.muli %arg0, %1 : i32
    %3 = arith.addi %arg1, %2 : i32
    %c0_i32 = arith.constant 0 : i32
    %c0_i32_1 = arith.constant 0 : i32
    return %3, %c0_i32 : i32, i32
  }
  func.func @transform_2(%arg0: i32, %arg1: i32) -> (i32, i32, i32) {
    %c0_i32 = arith.constant 0 : i32
    %c0_i32_0 = arith.constant 0 : i32
    %c0_i32_1 = arith.constant 0 : i32
    return %arg0, %c0_i32, %c0_i32_0 : i32, i32, i32
  }
  func.func @transform_3(%arg0: i32, %arg1: i32) -> (i32, i32, i32) {
    %c0_i32 = arith.constant 0 : i32
    %c0_i32_0 = arith.constant 0 : i32
    %c0_i32_1 = arith.constant 0 : i32
    return %arg0, %c0_i32, %c0_i32_0 : i32, i32, i32
  }
  func.func @transform_4(%arg0: i32, %arg1: i32) -> (i32, i32, i32) {
    %c0_i32 = arith.constant 0 : i32
    %c0_i32_0 = arith.constant 0 : i32
    %c0_i32_1 = arith.constant 0 : i32
    return %arg0, %c0_i32, %c0_i32_0 : i32, i32, i32
  }
  func.func @transform_5(%arg0: i32, %arg1: i32) -> (i32, i32, i32) {
    %c0_i32 = arith.constant 0 : i32
    %c0_i32_0 = arith.constant 0 : i32
    %c0_i32_1 = arith.constant 0 : i32
    return %arg0, %c0_i32, %c0_i32_0 : i32, i32, i32
  }
  func.func @transform_6(%arg0: i32, %arg1: i32) -> (i32, i32, i32, i32) {
    %c2_i32 = arith.constant 2 : i32
    %0 = arith.muli %c2_i32, %arg1 : i32
    %c2_i32_0 = arith.constant 2 : i32
    %1 = arith.subi %c2_i32_0, %0 : i32
    %2 = arith.muli %arg0, %1 : i32
    %3 = arith.addi %arg1, %2 : i32
    %c0_i32 = arith.constant 0 : i32
    %c0_i32_1 = arith.constant 0 : i32
    %c0_i32_2 = arith.constant 0 : i32
    return %arg0, %3, %c0_i32, %c0_i32_1 : i32, i32, i32, i32
  }
}

</mosaic_0001>

<llo_original>
// kernel: encoder_forward.1
$region0: #{encoder_forward.1}
  #allocation0 [shape = 'u32[]', space=smem, size = 0x4, offset = 0x4, fixed_abs, tag = 'smem constant byte address 0x4 - core index']
  #allocation1 [shape = 'u32[72,128]{1,0:T(1,128)}', space=vmem, size = 0x9000, scoped, tag = 'internal scratch']
  #allocation2 [shape = 'f32[4,32]{1,0:T(4,128)}', space=vmem, size = 0x800, scoped, tag = 'scratch operand']
  #allocation3 [shape = 'f32[16,96]{1,0:T(8,128)}', space=vmem, size = 0x2000, scoped, tag = 'scratch operand']
  #allocation4 [shape = 'f32[16,32]{1,0:T(8,128)}', space=vmem, size = 0x2000, scoped, tag = 'scratch operand']
  %s0 = inlined_call_operand.vmem [shape: f32[48,16], index: 0, kind: input, shape index: {}]
  %s1 = inlined_call_operand.vmem [shape: f32[48,1], index: 1, kind: input, shape index: {}]
  %s2 = inlined_call_operand.vmem [shape: f32[2,16,96], index: 2, kind: input, shape index: {}]
  %s3 = inlined_call_operand.vmem [shape: f32[2,1,96], index: 3, kind: input, shape index: {}]
  %s4 = inlined_call_operand.vmem [shape: f32[2,32,64], index: 4, kind: input, shape index: {}]
  %s5 = inlined_call_operand.vmem [shape: f32[2,32,32], index: 5, kind: input, shape index: {}]
  %s6 = inlined_call_operand.vmem [shape: f32[2,12,4,32], index: 6, kind: output, shape index: {}]
  %s7 = sld [smem:[#allocation0]]
  $region61: #{encoder_forward.1} parent=0
    _
  %s9 = ssub.s32 1, %s7
  %s10 = scalar_select 0, %s9, %s7
  loop: start=0, step=1, limit=8
  $region2: #{encoder_forward.1} parent=0 // loop_pre_header
    _
  $region3: #{encoder_forward.1} parent=0 // loop_header
    %s12 = sphi 0, %s16
    %p13 = scmp.ge.s32.totalorder %s12, 8
    %s19 = sphi 0, %s31
    %s20 = sphi 0, %s27
    %s21 = sphi 0, %s19
    %s22 = sphi 0, %s20
    %s23 = sphi 0, %s21
    %s24 = sphi 0, %s22
    %s42 = sphi 0, %s44
    %s45 = sphi 0, %s42
    %s46 = sphi 0, %s45
    %s62 = sphi 0, %s46
    %s76 = sphi 0, %s78
    %s79 = sphi 0, %s76
    %s80 = sphi 0, %s79
    %s96 = sphi 0, %s80
    %s102 = sphi 0, %s104
    %s105 = sphi 0, %s102
    %s106 = sphi 0, %s105
    %s122 = sphi 0, %s106
    %s128 = sphi 0, %s130
    %s131 = sphi 0, %s128
    %s132 = sphi 0, %s131
    %s148 = sphi 0, %s132
    %s154 = sphi 0, %s156
    %s157 = sphi 0, %s154
    %s158 = sphi 0, %s157
    %s174 = sphi 0, %s158
    %s180 = sphi 0, %s182
    %s183 = sphi 0, %s180
    %s184 = sphi 0, %s183
    %s200 = sphi 0, %s184
    %s216 = sphi 0, %s218
    %s219 = sphi 0, %s216
    %s220 = sphi 0, %s219
    %s236 = sphi 0, %s220
  $region4: #{encoder_forward.1} parent=0 // loop_header_branch
    %15 = sbr.rel (%p13) target = $region8
  $region5: #{encoder_forward.1} parent=0 // loop_body
    %s17 = ssub.s32 %s12, 1
    %s18 = ssub.s32 %s12, 2
    %s25 = sadd.s32 1, %s20
    %p26 = scmp.ge.s32.totalorder %s25, 3
    %s27 = scalar_select %p26, 0, %s25
    %s28 = sadd.s32 1, %s19
    %s29 = scalar_select %p26, %s28, %s19
    %p30 = scmp.ge.s32.totalorder %s29, 2
    %s31 = scalar_select %p30, 0, %s29
    %s32 = smul.u32 %s20, 2
    %s33 = ssub.s32 2, %s32
    %s34 = smul.u32 %s19, %s33
    %s35 = sadd.s32 %s20, %s34
    %s36 = smul.u32 %s27, 2
    %s37 = ssub.s32 2, %s36
    %s38 = smul.u32 %s31, %s37
    %s39 = sadd.s32 %s27, %s38
    %s40 = ssub.s32 %s35, %s39
    %p41 = scmp.eq.s32.totalorder %s40, 0
    %s43 = sadd.s32 %s42, 1
    %s44 = scalar_select %p41, %s42, %s43
    %p47 = pneg %p41
    %p48 = scmp.eq.s32.totalorder %s12, 5
    %p49 = por %p47, %p48
    %p50 = scmp.ne.s32.totalorder %s42, %s45
    %p51 = scmp.eq.s32.totalorder %s12, 0
    %p52 = por %p50, %p51
    %p53 = scmp.ne.s32.totalorder %s42, %s45
    %p54 = scmp.eq.s32.totalorder %s17, 5
    %p55 = por %p53, %p54
    %p56 = scmp.ne.s32.totalorder %s45, %s46
    %p57 = scmp.eq.s32.totalorder %s17, 0
    %p58 = por %p56, %p57
    %p59 = scmp.ne.s32.totalorder %s45, %s46
    %p60 = scmp.eq.s32.totalorder %s18, 5
    %p61 = por %p59, %p60
    %p63 = scmp.ne.s32.totalorder %s46, %s62
    %p64 = scmp.eq.s32.totalorder %s18, 0
    %p65 = por %p63, %p64
    %s66 = smul.u32 %s20, 2
    %s67 = ssub.s32 2, %s66
    %s68 = smul.u32 %s19, %s67
    %s69 = sadd.s32 %s20, %s68
    %s70 = smul.u32 %s27, 2
    %s71 = ssub.s32 2, %s70
    %s72 = smul.u32 %s31, %s71
    %s73 = sadd.s32 %s27, %s72
    %s74 = ssub.s32 %s69, %s73
    %p75 = scmp.eq.s32.totalorder %s74, 0
    %s77 = sadd.s32 %s76, 1
    %s78 = scalar_select %p75, %s76, %s77
    %p81 = pneg %p75
    %p82 = scmp.eq.s32.totalorder %s12, 5
    %p83 = por %p81, %p82
    %p84 = scmp.ne.s32.totalorder %s76, %s79
    %p85 = scmp.eq.s32.totalorder %s12, 0
    %p86 = por %p84, %p85
    %p87 = scmp.ne.s32.totalorder %s76, %s79
    %p88 = scmp.eq.s32.totalorder %s17, 5
    %p89 = por %p87, %p88
    %p90 = scmp.ne.s32.totalorder %s79, %s80
    %p91 = scmp.eq.s32.totalorder %s17, 0
    %p92 = por %p90, %p91
    %p93 = scmp.ne.s32.totalorder %s79, %s80
    %p94 = scmp.eq.s32.totalorder %s18, 5
    %p95 = por %p93, %p94
    %p97 = scmp.ne.s32.totalorder %s80, %s96
    %p98 = scmp.eq.s32.totalorder %s18, 0
    %p99 = por %p97, %p98
    %s100 = ssub.s32 %s19, %s31
    %p101 = scmp.eq.s32.totalorder %s100, 0
    %s103 = sadd.s32 %s102, 1
    %s104 = scalar_select %p101, %s102, %s103
    %p107 = pneg %p101
    %p108 = scmp.eq.s32.totalorder %s12, 5
    %p109 = por %p107, %p108
    %p110 = scmp.ne.s32.totalorder %s102, %s105
    %p111 = scmp.eq.s32.totalorder %s12, 0
    %p112 = por %p110, %p111
    %p113 = scmp.ne.s32.totalorder %s102, %s105
    %p114 = scmp.eq.s32.totalorder %s17, 5
    %p115 = por %p113, %p114
    %p116 = scmp.ne.s32.totalorder %s105, %s106
    %p117 = scmp.eq.s32.totalorder %s17, 0
    %p118 = por %p116, %p117
    %p119 = scmp.ne.s32.totalorder %s105, %s106
    %p120 = scmp.eq.s32.totalorder %s18, 5
    %p121 = por %p119, %p120
    %p123 = scmp.ne.s32.totalorder %s106, %s122
    %p124 = scmp.eq.s32.totalorder %s18, 0
    %p125 = por %p123, %p124
    %s126 = ssub.s32 %s19, %s31
    %p127 = scmp.eq.s32.totalorder %s126, 0
    %s129 = sadd.s32 %s128, 1
    %s130 = scalar_select %p127, %s128, %s129
    %p133 = pneg %p127
    %p134 = scmp.eq.s32.totalorder %s12, 5
    %p135 = por %p133, %p134
    %p136 = scmp.ne.s32.totalorder %s128, %s131
    %p137 = scmp.eq.s32.totalorder %s12, 0
    %p138 = por %p136, %p137
    %p139 = scmp.ne.s32.totalorder %s128, %s131
    %p140 = scmp.eq.s32.totalorder %s17, 5
    %p141 = por %p139, %p140
    %p142 = scmp.ne.s32.totalorder %s131, %s132
    %p143 = scmp.eq.s32.totalorder %s17, 0
    %p144 = por %p142, %p143
    %p145 = scmp.ne.s32.totalorder %s131, %s132
    %p146 = scmp.eq.s32.totalorder %s18, 5
    %p147 = por %p145, %p146
    %p149 = scmp.ne.s32.totalorder %s132, %s148
    %p150 = scmp.eq.s32.totalorder %s18, 0
    %p151 = por %p149, %p150
    %s152 = ssub.s32 %s19, %s31
    %p153 = scmp.eq.s32.totalorder %s152, 0
    %s155 = sadd.s32 %s154, 1
    %s156 = scalar_select %p153, %s154, %s155
    %p159 = pneg %p153
    %p160 = scmp.eq.s32.totalorder %s12, 5
    %p161 = por %p159, %p160
    %p162 = scmp.ne.s32.totalorder %s154, %s157
    %p163 = scmp.eq.s32.totalorder %s12, 0
    %p164 = por %p162, %p163
    %p165 = scmp.ne.s32.totalorder %s154, %s157
    %p166 = scmp.eq.s32.totalorder %s17, 5
    %p167 = por %p165, %p166
    %p168 = scmp.ne.s32.totalorder %s157, %s158
    %p169 = scmp.eq.s32.totalorder %s17, 0
    %p170 = por %p168, %p169
    %p171 = scmp.ne.s32.totalorder %s157, %s158
    %p172 = scmp.eq.s32.totalorder %s18, 5
    %p173 = por %p171, %p172
    %p175 = scmp.ne.s32.totalorder %s158, %s174
    %p176 = scmp.eq.s32.totalorder %s18, 0
    %p177 = por %p175, %p176
    %s178 = ssub.s32 %s19, %s31
    %p179 = scmp.eq.s32.totalorder %s178, 0
    %s181 = sadd.s32 %s180, 1
    %s182 = scalar_select %p179, %s180, %s181
    %p185 = pneg %p179
    %p186 = scmp.eq.s32.totalorder %s12, 5
    %p187 = por %p185, %p186
    %p188 = scmp.ne.s32.totalorder %s180, %s183
    %p189 = scmp.eq.s32.totalorder %s12, 0
    %p190 = por %p188, %p189
    %p191 = scmp.ne.s32.totalorder %s180, %s183
    %p192 = scmp.eq.s32.totalorder %s17, 5
    %p193 = por %p191, %p192
    %p194 = scmp.ne.s32.totalorder %s183, %s184
    %p195 = scmp.eq.s32.totalorder %s17, 0
    %p196 = por %p194, %p195
    %p197 = scmp.ne.s32.totalorder %s183, %s184
    %p198 = scmp.eq.s32.totalorder %s18, 5
    %p199 = por %p197, %p198
    %p201 = scmp.ne.s32.totalorder %s184, %s200
    %p202 = scmp.eq.s32.totalorder %s18, 0
    %p203 = por %p201, %p202
    %s204 = smul.u32 %s20, 2
    %s205 = ssub.s32 2, %s204
    %s206 = smul.u32 %s19, %s205
    %s207 = sadd.s32 %s20, %s206
    %s208 = smul.u32 %s27, 2
    %s209 = ssub.s32 2, %s208
    %s210 = smul.u32 %s31, %s209
    %s211 = sadd.s32 %s27, %s210
    %s212 = ssub.s32 %s19, %s31
    %s213 = ssub.s32 %s207, %s211
    %s214 = sor.u32 %s212, %s213
    %p215 = scmp.eq.s32.totalorder %s214, 0
    %s217 = sadd.s32 %s216, 1
    %s218 = scalar_select %p215, %s216, %s217
    %p221 = pneg %p215
    %p222 = scmp.eq.s32.totalorder %s12, 5
    %p223 = por %p221, %p222
    %p224 = scmp.ne.s32.totalorder %s216, %s219
    %p225 = scmp.eq.s32.totalorder %s12, 0
    %p226 = por %p224, %p225
    %p227 = scmp.ne.s32.totalorder %s216, %s219
    %p228 = scmp.eq.s32.totalorder %s17, 5
    %p229 = por %p227, %p228
    %p230 = scmp.ne.s32.totalorder %s219, %s220
    %p231 = scmp.eq.s32.totalorder %s17, 0
    %p232 = por %p230, %p231
    %p233 = scmp.ne.s32.totalorder %s219, %s220
    %p234 = scmp.eq.s32.totalorder %s18, 5
    %p235 = por %p233, %p234
    %p237 = scmp.ne.s32.totalorder %s220, %s236
    %p238 = scmp.eq.s32.totalorder %s18, 0
    %p239 = por %p237, %p238
    %p240 = scmp.le.s32.totalorder 1, %s12
    %p241 = scmp.lt.s32.totalorder %s12, 7
    %p242 = pnand %p240, %p241
    %p243 = pneg %p242
    // Predicated region
    $region9: #{encoder_forward.1} parent=5 // pred_check
      _
    $region10: #{encoder_forward.1} parent=5 // pred_check_branch
      %245 = sbr.rel (%p242) target = $region12
    $region11: #{encoder_forward.1} parent=5 // pred_region
      %s246 = ssub.s32 %s12, 1
    $region12: #{encoder_forward.1} parent=5 // pred_fallthru
      _
    %p247 = scmp.lt.s32.totalorder %s12, 6
    // Predicated region
    $region13: #{encoder_forward.1} parent=5 // pred_check
      %p248 = pneg %p247
    $region14: #{encoder_forward.1} parent=5 // pred_check_branch
      %250 = sbr.rel (%p248) target = $region16
    $region15: #{encoder_forward.1} parent=5 // pred_region
      // Predicated region
      $region17: #{encoder_forward.1} parent=15 // pred_check
        %p251 = pneg %p52
      $region18: #{encoder_forward.1} parent=15 // pred_check_branch
        %253 = sbr.rel (%p251) target = $region20
      $region19: #{encoder_forward.1} parent=15 // pred_region
        %s254 = smul.u32 %s20, 2
        %s255 = ssub.s32 2, %s254
        %s256 = smul.u32 %s19, %s255
        %s257 = sadd.s32 %s20, %s256
        %s258 = smul.u32 2, %s257
        %p259 = scmp.lt.s32.totalorder %s258, 5
        %s260 = scalar_select %p259, %s258, 5
        %s261 = smul.addr %s260, 8
        %s262 = scalar_lea.vmem %s0, %s261
        %s263 = smul.u32 %s20, 2
        %s264 = ssub.s32 2, %s263
        %s265 = smul.u32 %s19, %s264
        %s266 = sadd.s32 %s20, %s265
        %s267 = smul.u32 2, %s266
      $region20: #{encoder_forward.1} parent=15 // pred_fallthru
        _
      // Predicated region
      $region21: #{encoder_forward.1} parent=15 // pred_check
        %p268 = pneg %p86
      $region22: #{encoder_forward.1} parent=15 // pred_check_branch
        %270 = sbr.rel (%p268) target = $region24
      $region23: #{encoder_forward.1} parent=15 // pred_region
        %s271 = smul.u32 %s20, 2
        %s272 = ssub.s32 2, %s271
        %s273 = smul.u32 %s19, %s272
        %s274 = sadd.s32 %s20, %s273
        %s275 = smul.u32 2, %s274
        %p276 = scmp.lt.s32.totalorder %s275, 5
        %s277 = scalar_select %p276, %s275, 5
        %s278 = smul.addr %s277, 8
        %s279 = scalar_lea.vmem %s1, %s278
        %s280 = smul.u32 %s20, 2
        %s281 = ssub.s32 2, %s280
        %s282 = smul.u32 %s19, %s281
        %s283 = sadd.s32 %s20, %s282
        %s284 = smul.u32 2, %s283
      $region24: #{encoder_forward.1} parent=15 // pred_fallthru
        _
      // Predicated region
      $region25: #{encoder_forward.1} parent=15 // pred_check
        %p285 = pneg %p112
      $region26: #{encoder_forward.1} parent=15 // pred_check_branch
        %287 = sbr.rel (%p285) target = $region28
      $region27: #{encoder_forward.1} parent=15 // pred_region
        %p288 = scmp.lt.s32.totalorder %s19, 1
        %s289 = scalar_select %p288, %s19, 1
        %s290 = smul.addr %s289, 2
        %s291 = smul.addr %s290, 8
        %s292 = scalar_lea.vmem %s2, %s291
      $region28: #{encoder_forward.1} parent=15 // pred_fallthru
        _
      // Predicated region
      $region29: #{encoder_forward.1} parent=15 // pred_check
        %p293 = pneg %p138
      $region30: #{encoder_forward.1} parent=15 // pred_check_branch
        %295 = sbr.rel (%p293) target = $region32
      $region31: #{encoder_forward.1} parent=15 // pred_region
        %p296 = scmp.lt.s32.totalorder %s19, 1
        %s297 = scalar_select %p296, %s19, 1
        %s298 = scalar_lea.vmem %s3, %s297
      $region32: #{encoder_forward.1} parent=15 // pred_fallthru
        _
      // Predicated region
      $region33: #{encoder_forward.1} parent=15 // pred_check
        %p299 = pneg %p164
      $region34: #{encoder_forward.1} parent=15 // pred_check_branch
        %301 = sbr.rel (%p299) target = $region36
      $region35: #{encoder_forward.1} parent=15 // pred_region
        %p302 = scmp.lt.s32.totalorder %s19, 1
        %s303 = scalar_select %p302, %s19, 1
        %s304 = smul.addr %s303, 4
        %s305 = smul.addr %s304, 8
        %s306 = scalar_lea.vmem %s4, %s305
      $region36: #{encoder_forward.1} parent=15 // pred_fallthru
        _
      // Predicated region
      $region37: #{encoder_forward.1} parent=15 // pred_check
        %p307 = pneg %p190
      $region38: #{encoder_forward.1} parent=15 // pred_check_branch
        %309 = sbr.rel (%p307) target = $region40
      $region39: #{encoder_forward.1} parent=15 // pred_region
        %p310 = scmp.lt.s32.totalorder %s19, 1
        %s311 = scalar_select %p310, %s19, 1
        %s312 = smul.addr %s311, 4
        %s313 = smul.addr %s312, 8
        %s314 = scalar_lea.vmem %s5, %s313
      $region40: #{encoder_forward.1} parent=15 // pred_fallthru
        _
    $region16: #{encoder_forward.1} parent=5 // pred_fallthru
      _
    %p315 = scmp.le.s32.totalorder 1, %s12
    %p316 = scmp.lt.s32.totalorder %s12, 7
    %p317 = pnand %p315, %p316
    %p318 = pneg %p317
    // Predicated region
    $region41: #{encoder_forward.1} parent=5 // pred_check
      _
    $region42: #{encoder_forward.1} parent=5 // pred_check_branch
      %320 = sbr.rel (%p317) target = $region44
    $region43: #{encoder_forward.1} parent=5 // pred_region
      %s321 = ssub.s32 %s12, 1
      %s322 = smul.u32 %s22, 2
      %s323 = ssub.s32 2, %s322
      %s324 = smul.u32 %s21, %s323
      %s325 = sadd.s32 %s22, %s324
      %s326 = smul.u32 2, %s325
      %p327 = scmp.lt.s32.totalorder %s326, 5
      %s328 = scalar_select %p327, %s326, 5
      %s329 = smul.addr %s328, 8
      %s330 = scalar_lea.vmem %s0, %s329
      %p331 = pneg %p58
      %p332 = pneg %p55
      %s333 = smul.u32 %s22, 2
      %s334 = ssub.s32 2, %s333
      %s335 = smul.u32 %s21, %s334
      %s336 = sadd.s32 %s22, %s335
      %s337 = smul.u32 2, %s336
      %p338 = scmp.lt.s32.totalorder %s337, 5
      %s339 = scalar_select %p338, %s337, 5
      %s340 = smul.addr %s339, 8
      %s341 = scalar_lea.vmem %s1, %s340
      %p342 = pneg %p92
      %p343 = pneg %p89
      %p344 = scmp.lt.s32.totalorder %s21, 1
      %s345 = scalar_select %p344, %s21, 1
      %s346 = smul.addr %s345, 2
      %s347 = smul.addr %s346, 8
      %s348 = scalar_lea.vmem %s2, %s347
      %p349 = pneg %p118
      %p350 = pneg %p115
      %p351 = scmp.lt.s32.totalorder %s21, 1
      %s352 = scalar_select %p351, %s21, 1
      %s353 = scalar_lea.vmem %s3, %s352
      %p354 = pneg %p144
      %p355 = pneg %p141
      %p356 = scmp.lt.s32.totalorder %s21, 1
      %s357 = scalar_select %p356, %s21, 1
      %s358 = smul.addr %s357, 4
      %s359 = smul.addr %s358, 8
      %s360 = scalar_lea.vmem %s4, %s359
      %p361 = pneg %p170
      %p362 = pneg %p167
      %p363 = scmp.lt.s32.totalorder %s21, 1
      %s364 = scalar_select %p363, %s21, 1
      %s365 = smul.addr %s364, 4
      %s366 = smul.addr %s365, 8
      %s367 = scalar_lea.vmem %s5, %s366
      %p368 = pneg %p196
      %p369 = pneg %p193
      %p370 = pneg %p232
      %p371 = pneg %p229
      %s372 = smul.u32 %s22, 2
      %s373 = ssub.s32 2, %s372
      %s374 = smul.u32 %s21, %s373
      %s375 = sadd.s32 %s22, %s374
      %s376 = smul.u32 4, %s375
      %p377 = scmp.lt.s32.totalorder %s21, 1
      %s378 = scalar_select %p377, %s21, 1
      %p379 = scmp.lt.s32.totalorder %s376, 11
      %s380 = scalar_select %p379, %s376, 11
      %s381 = smul.addr %s378, 12
      %s382 = sadd.s32 %s380, %s381
      %s383 = smul.addr %s382, 4
      %s384 = scalar_lea.vmem %s6, %s383
      %s385 = smul.u32 %s22, 2
      %s386 = ssub.s32 2, %s385
      %s387 = smul.u32 %s21, %s386
      %s388 = sadd.s32 %s22, %s387
      %s389 = smul.u32 2, %s388
      %p390 = scmp.lt.s32.totalorder %s389, 5
      %s391 = scalar_select %p390, %s389, 5
      %s392 = smul.addr %s391, 8
      %s393 = scalar_lea.vmem %s0, %s392
      %s394 = smul.u32 %s22, 2
      %s395 = ssub.s32 2, %s394
      %s396 = smul.u32 %s21, %s395
      %s397 = sadd.s32 %s22, %s396
      %s398 = smul.u32 2, %s397
      %s399 = smul.u32 %s22, 2
      %s400 = ssub.s32 2, %s399
      %s401 = smul.u32 %s21, %s400
      %s402 = sadd.s32 %s22, %s401
      %s403 = smul.u32 2, %s402
      %p404 = scmp.lt.s32.totalorder %s403, 5
      %s405 = scalar_select %p404, %s403, 5
      %s406 = smul.addr %s405, 8
      %s407 = scalar_lea.vmem %s1, %s406
      %s408 = smul.u32 %s22, 2
      %s409 = ssub.s32 2, %s408
      %s410 = smul.u32 %s21, %s409
      %s411 = sadd.s32 %s22, %s410
      %s412 = smul.u32 2, %s411
      %p413 = scmp.lt.s32.totalorder %s21, 1
      %s414 = scalar_select %p413, %s21, 1
      %s415 = smul.addr %s414, 2
      %s416 = smul.addr %s415, 8
      %s417 = scalar_lea.vmem %s2, %s416
      %p418 = scmp.lt.s32.totalorder %s21, 1
      %s419 = scalar_select %p418, %s21, 1
      %s420 = scalar_lea.vmem %s3, %s419
      %p421 = scmp.lt.s32.totalorder %s21, 1
      %s422 = scalar_select %p421, %s21, 1
      %s423 = smul.addr %s422, 4
      %s424 = smul.addr %s423, 8
      %s425 = scalar_lea.vmem %s4, %s424
      %p426 = scmp.lt.s32.totalorder %s21, 1
      %s427 = scalar_select %p426, %s21, 1
      %s428 = smul.addr %s427, 4
      %s429 = smul.addr %s428, 8
      %s430 = scalar_lea.vmem %s5, %s429
      %s431 = smul.u32 %s22, 2
      %s432 = ssub.s32 2, %s431
      %s433 = smul.u32 %s21, %s432
      %s434 = sadd.s32 %s22, %s433
      %s435 = smul.u32 4, %s434
      %p436 = scmp.lt.s32.totalorder %s21, 1
      %s437 = scalar_select %p436, %s21, 1
      %p438 = scmp.lt.s32.totalorder %s435, 11
      %s439 = scalar_select %p438, %s435, 11
      %s440 = smul.addr %s437, 12
      %s441 = sadd.s32 %s439, %s440
      %s442 = smul.addr %s441, 4
      %s443 = scalar_lea.vmem %s6, %s442
      %s444 = smul.u32 %s22, 2
      %s445 = ssub.s32 2, %s444
      %s446 = smul.u32 %s21, %s445
      %s447 = sadd.s32 %s22, %s446
      %s448 = smul.u32 4, %s447
      %p449 = scmp.eq.s32.totalorder %s22, 0
      // Predicated region
      $region45: #{encoder_forward.1} parent=43 // pred_check
        %p450 = pneg %p449
      $region46: #{encoder_forward.1} parent=43 // pred_check_branch
        %452 = sbr.rel (%p450) target = $region48
      $region47: #{encoder_forward.1} parent=43 // pred_region
        %vm453 = vcmask 257024
        %454 = vst.msk [vmem:[#allocation2] sm:$0xf] %vm453, 0.0
      $region48: #{encoder_forward.1} parent=43 // pred_fallthru
        _
      %v455 = vld [vmem:[%s393] sm:$0xff]
      %v456 = vld [vmem:[%s393 + $0x8] sm:$0xff]
      %v457 = vld [vmem:[%s417] sm:$0xff]
      %v458 = vld [vmem:[%s417 + $0x8] sm:$0xff]
      %v459 = vld [vmem:[%s420] sm:$0x1]
      %v461 = vperm.slane %v459, 0
      %vm463 = vcmask 130048
      %v465 = vsel %vm463, %v455, 0
      %v468 = vsel %vm463, %v456, 0
      %470 = vmatpush.msra.mxu0 0.0
      %471 = vmatpush.msra.mxu0 0.0
      %472 = vmatpush.msra.mxu0 0.0
      %473 = vmatpush.msra.mxu0 0.0
      %474 = vmatpush.msra.mxu0 0.0
      %475 = vmatpush.msra.mxu0 0.0
      %476 = vmatpush.msra.mxu0 0.0
      %477 = vmatpush.msra.mxu0 0.0
      %478 = vmatpush.msra.mxu0 0.0
      %479 = vmatpush.msra.mxu0 0.0
      %480 = vmatpush.msra.mxu0 0.0
      %481 = vmatpush.msra.mxu0 0.0
      %482 = vmatpush.msra.mxu0 0.0
      %483 = vmatpush.msra.mxu0 0.0
      %484 = vmatpush.msra.mxu0 %v458
      %485 = vmatpush.msra.mxu0 %v457
      %486 = vmatmul.f32.gmra.mxu0 %v465
      %v487 = vpop.f32.mrf.mxu0
      %v488 = vadd.f32 %v461, %v487
      %489 = vmatmul.f32.gmra.mxu0 %v468
      %v490 = vpop.f32.mrf.mxu0
      %v491 = vadd.f32 %v461, %v490
      %492 = vdwg.mxu0
      %vm493 = vcmask 785408
      %494 = vst.msk [vmem:[#allocation3] sm:$0xff] %vm493, %v488
      %495 = vst.msk [vmem:[#allocation3 + $0x8] sm:$0xff] %vm493, %v491
      %v496 = vld [vmem:[%s407] sm:$0xff]
      %v497 = vld [vmem:[%s407 + $0x8] sm:$0xff]
      %499 = vset.pattern.permute.xlu0 0
      %500 = vperm.xlu0 %499, %v496
      %v501 = vpop.permute.xlu0 %500
      %504 = vset.pattern.permute.xlu0 0
      %505 = vperm.xlu0 %504, %v497
      %v506 = vpop.permute.xlu0 %505
      %vm508 = vcmask 261120
      %509 = vst.msk [vmem:[#allocation4] sm:$0xff] %vm508, %v501
      %510 = vst.msk [vmem:[#allocation4 + $0x8] sm:$0xff] %vm508, %v506
      %v511 = vld [vmem:[%s425] sm:$0xff]
      %v512 = vld [vmem:[%s425 + $0x8] sm:$0xff]
      %v513 = vld [vmem:[%s425 + $0x10] sm:$0xff]
      %v514 = vld [vmem:[%s425 + $0x18] sm:$0xff]
      %v515 = vld [vmem:[%s430] sm:$0xff]
      %v516 = vld [vmem:[%s430 + $0x8] sm:$0xff]
      %v517 = vld [vmem:[%s430 + $0x10] sm:$0xff]
      %v518 = vld [vmem:[%s430 + $0x18] sm:$0xff]
      %v519 = vld [vmem:[#allocation2] sm:$0xf]
      %s520 = smul.u32 %s21, 3
      %s521 = smul.u32 %s21, 12
      %s522 = scalar_lea.vmem [#allocation3], %s521
      %v523 = vld [vmem:[%s522] sm:$0xf]
      %s524 = scalar_lea.vmem [#allocation4], %s521
      %v525 = vld [vmem:[%s524] sm:$0xf]
      %v527 = vsel %vm508, %v519, 0
      %529 = vmatpush.msra.mxu0 0.0
      %530 = vmatpush.msra.mxu0 0.0
      %531 = vmatpush.msra.mxu0 0.0
      %532 = vmatpush.msra.mxu0 0.0
      %533 = vmatpush.msra.mxu0 0.0
      %534 = vmatpush.msra.mxu0 0.0
      %535 = vmatpush.msra.mxu0 0.0
      %536 = vmatpush.msra.mxu0 0.0
      %537 = vmatpush.msra.mxu0 0.0
      %538 = vmatpush.msra.mxu0 0.0
      %539 = vmatpush.msra.mxu0 0.0
      %540 = vmatpush.msra.mxu0 0.0
      %541 = vmatpush.msra.mxu0 %v514
      %542 = vmatpush.msra.mxu0 %v513
      %543 = vmatpush.msra.mxu0 %v512
      %544 = vmatpush.msra.mxu0 %v511
      %545 = vmatmul.f32.gmra.mxu0 %v527
      %v546 = vpop.f32.mrf.mxu0
      %v547 = vadd.f32 0.0, %v546
      %548 = vdwg.mxu0
      %v549 = vadd.f32 %v523, %v547
      %v550 = vxor.u32 %v549, 2147483648
      %v551 = vmul.f32 %v550, 1.442695
      %v552 = vpow.pop %v551
      %v553 = vadd.f32 %v552, 1.0
      %v554 = vrcp.pop %v553
      %v555 = vmul.f32 %v553, %v554
      %v556 = vsub.f32 1.0, %v555
      %v557 = vmul.f32 %v554, %v556
      %v558 = vadd.f32 %v554, %v557
      %vm559 = vweird.f32 %v553
      %vm560 = vweird.f32 %v554
      %vm561 = vmor %vm559, %vm560
      %v562 = vsel %vm561, %v554, %v558
      %v563 = vand.u32 2147483647, %v553
      %vm564 = vcmp.eq.f32.partialorder %v563, 8.507059e+37
      %v565 = vand.u32 %v553, 2147483648
      %v566 = vor.u32 1.1754944e-38, %v565
      %v567 = vsel %vm564, %v566, %v562
      %v568 = vmul.f32 1.0, %v567
      %569 = vrot.lane.b32.xlu0 %v519, 32
      %v570 = vpop.permute.xlu0 %569
      %v572 = vmul.f32 %v568, %v570
      %574 = vrot.lane.b32.xlu0 %v572, 96
      %v575 = vpop.permute.xlu0 %574
      %v576 = vsel %vm508, %v575, 0
      %578 = vmatpush.msra.mxu0 0.0
      %579 = vmatpush.msra.mxu0 0.0
      %580 = vmatpush.msra.mxu0 0.0
      %581 = vmatpush.msra.mxu0 0.0
      %582 = vmatpush.msra.mxu0 0.0
      %583 = vmatpush.msra.mxu0 0.0
      %584 = vmatpush.msra.mxu0 0.0
      %585 = vmatpush.msra.mxu0 0.0
      %586 = vmatpush.msra.mxu0 0.0
      %587 = vmatpush.msra.mxu0 0.0
      %588 = vmatpush.msra.mxu0 0.0
      %589 = vmatpush.msra.mxu0 0.0
      %590 = vmatpush.msra.mxu0 %v518
      %591 = vmatpush.msra.mxu0 %v517
      %592 = vmatpush.msra.mxu0 %v516
      %593 = vmatpush.msra.mxu0 %v515
      %594 = vmatmul.f32.gmra.mxu0 %v576
      %v595 = vpop.f32.mrf.mxu0
      %v596 = vadd.f32 0.0, %v595
      %597 = vdwg.mxu0
      %599 = vrot.lane.b32.xlu0 %v596, 64
      %v600 = vpop.permute.xlu0 %599
      %v602 = vadd.f32 %v523, %v600
      %v603 = vtanh.pop %v602
      %v604 = vmul.f32 %v525, %v568
      %605 = vrot.lane.b32.xlu0 %v519, 64
      %v606 = vpop.permute.xlu0 %605
      %v608 = vsub.f32 %v603, %v606
      %610 = vrot.lane.b32.xlu0 %v608, 64
      %v611 = vpop.permute.xlu0 %610
      %v613 = vmul.f32 %v604, %v611
      %v614 = vadd.f32 %v519, %v613
      %s615 = smul.u32 %s520, 4
      %s616 = scalar_lea.vmem %s443, %s615
      %vm617 = vcmask 257024
      %618 = vst.msk [vmem:[%s616] sm:$0xf] %vm617, %v614
      %s619 = sadd.s32 %s21, 1
      %s620 = smul.u32 %s619, 4
      %s621 = scalar_lea.vmem [#allocation3], %s620
      %v622 = vld [vmem:[%s621] sm:$0xf]
      %s623 = scalar_lea.vmem [#allocation4], %s620
      %v624 = vld [vmem:[%s623] sm:$0xf]
      %v626 = vsel %vm508, %v614, 0
      %628 = vmatpush.msra.mxu0 0.0
      %629 = vmatpush.msra.mxu0 0.0
      %630 = vmatpush.msra.mxu0 0.0
      %631 = vmatpush.msra.mxu0 0.0
      %632 = vmatpush.msra.mxu0 0.0
      %633 = vmatpush.msra.mxu0 0.0
      %634 = vmatpush.msra.mxu0 0.0
      %635 = vmatpush.msra.mxu0 0.0
      %636 = vmatpush.msra.mxu0 0.0
      %637 = vmatpush.msra.mxu0 0.0
      %638 = vmatpush.msra.mxu0 0.0
      %639 = vmatpush.msra.mxu0 0.0
      %640 = vmatpush.msra.mxu0 %v514
      %641 = vmatpush.msra.mxu0 %v513
      %642 = vmatpush.msra.mxu0 %v512
      %643 = vmatpush.msra.mxu0 %v511
      %644 = vmatmul.f32.gmra.mxu0 %v626
      %v645 = vpop.f32.mrf.mxu0
      %v646 = vadd.f32 0.0, %v645
      %647 = vdwg.mxu0
      %v648 = vadd.f32 %v622, %v646
      %v649 = vxor.u32 %v648, 2147483648
      %v650 = vmul.f32 %v649, 1.442695
      %v651 = vpow.pop %v650
      %v652 = vadd.f32 %v651, 1.0
      %v653 = vrcp.pop %v652
      %v654 = vmul.f32 %v652, %v653
      %v655 = vsub.f32 1.0, %v654
      %v656 = vmul.f32 %v653, %v655
      %v657 = vadd.f32 %v653, %v656
      %vm658 = vweird.f32 %v652
      %vm659 = vweird.f32 %v653
      %vm660 = vmor %vm658, %vm659
      %v661 = vsel %vm660, %v653, %v657
      %v662 = vand.u32 2147483647, %v652
      %vm663 = vcmp.eq.f32.partialorder %v662, 8.507059e+37
      %v664 = vand.u32 %v652, 2147483648
      %v665 = vor.u32 1.1754944e-38, %v664
      %v666 = vsel %vm663, %v665, %v661
      %v667 = vmul.f32 1.0, %v666
      %668 = vrot.lane.b32.xlu0 %v614, 32
      %v669 = vpop.permute.xlu0 %668
      %v671 = vmul.f32 %v667, %v669
      %673 = vrot.lane.b32.xlu0 %v671, 96
      %v674 = vpop.permute.xlu0 %673
      %v675 = vsel %vm508, %v674, 0
      %677 = vmatpush.msra.mxu0 0.0
      %678 = vmatpush.msra.mxu0 0.0
      %679 = vmatpush.msra.mxu0 0.0
      %680 = vmatpush.msra.mxu0 0.0
      %681 = vmatpush.msra.mxu0 0.0
      %682 = vmatpush.msra.mxu0 0.0
      %683 = vmatpush.msra.mxu0 0.0
      %684 = vmatpush.msra.mxu0 0.0
      %685 = vmatpush.msra.mxu0 0.0
      %686 = vmatpush.msra.mxu0 0.0
      %687 = vmatpush.msra.mxu0 0.0
      %688 = vmatpush.msra.mxu0 0.0
      %689 = vmatpush.msra.mxu0 %v518
      %690 = vmatpush.msra.mxu0 %v517
      %691 = vmatpush.msra.mxu0 %v516
      %692 = vmatpush.msra.mxu0 %v515
      %693 = vmatmul.f32.gmra.mxu0 %v675
      %v694 = vpop.f32.mrf.mxu0
      %v695 = vadd.f32 0.0, %v694
      %696 = vdwg.mxu0
      %698 = vrot.lane.b32.xlu0 %v695, 64
      %v699 = vpop.permute.xlu0 %698
      %v701 = vadd.f32 %v622, %v699
      %v702 = vtanh.pop %v701
      %v703 = vmul.f32 %v624, %v667
      %704 = vrot.lane.b32.xlu0 %v614, 64
      %v705 = vpop.permute.xlu0 %704
      %v707 = vsub.f32 %v702, %v705
      %709 = vrot.lane.b32.xlu0 %v707, 64
      %v710 = vpop.permute.xlu0 %709
      %v712 = vmul.f32 %v703, %v710
      %v713 = vadd.f32 %v614, %v712
      %s714 = scalar_lea.vmem %s443, %s620
      %715 = vst.msk [vmem:[%s714] sm:$0xf] %vm617, %v713
      %s716 = ssub.s32 2, %s21
      %s717 = smul.u32 %s716, 4
      %s718 = scalar_lea.vmem [#allocation3], %s717
      %v719 = vld [vmem:[%s718] sm:$0xf]
      %s720 = scalar_lea.vmem [#allocation4], %s717
      %v721 = vld [vmem:[%s720] sm:$0xf]
      %v723 = vsel %vm508, %v713, 0
      %725 = vmatpush.msra.mxu0 0.0
      %726 = vmatpush.msra.mxu0 0.0
      %727 = vmatpush.msra.mxu0 0.0
      %728 = vmatpush.msra.mxu0 0.0
      %729 = vmatpush.msra.mxu0 0.0
      %730 = vmatpush.msra.mxu0 0.0
      %731 = vmatpush.msra.mxu0 0.0
      %732 = vmatpush.msra.mxu0 0.0
      %733 = vmatpush.msra.mxu0 0.0
      %734 = vmatpush.msra.mxu0 0.0
      %735 = vmatpush.msra.mxu0 0.0
      %736 = vmatpush.msra.mxu0 0.0
      %737 = vmatpush.msra.mxu0 %v514
      %738 = vmatpush.msra.mxu0 %v513
      %739 = vmatpush.msra.mxu0 %v512
      %740 = vmatpush.msra.mxu0 %v511
      %741 = vmatmul.f32.gmra.mxu0 %v723
      %v742 = vpop.f32.mrf.mxu0
      %v743 = vadd.f32 0.0, %v742
      %744 = vdwg.mxu0
      %v745 = vadd.f32 %v719, %v743
      %v746 = vxor.u32 %v745, 2147483648
      %v747 = vmul.f32 %v746, 1.442695
      %v748 = vpow.pop %v747
      %v749 = vadd.f32 %v748, 1.0
      %v750 = vrcp.pop %v749
      %v751 = vmul.f32 %v749, %v750
      %v752 = vsub.f32 1.0, %v751
      %v753 = vmul.f32 %v750, %v752
      %v754 = vadd.f32 %v750, %v753
      %vm755 = vweird.f32 %v749
      %vm756 = vweird.f32 %v750
      %vm757 = vmor %vm755, %vm756
      %v758 = vsel %vm757, %v750, %v754
      %v759 = vand.u32 2147483647, %v749
      %vm760 = vcmp.eq.f32.partialorder %v759, 8.507059e+37
      %v761 = vand.u32 %v749, 2147483648
      %v762 = vor.u32 1.1754944e-38, %v761
      %v763 = vsel %vm760, %v762, %v758
      %v764 = vmul.f32 1.0, %v763
      %765 = vrot.lane.b32.xlu0 %v713, 32
      %v766 = vpop.permute.xlu0 %765
      %v768 = vmul.f32 %v764, %v766
      %770 = vrot.lane.b32.xlu0 %v768, 96
      %v771 = vpop.permute.xlu0 %770
      %v772 = vsel %vm508, %v771, 0
      %774 = vmatpush.msra.mxu0 0.0
      %775 = vmatpush.msra.mxu0 0.0
      %776 = vmatpush.msra.mxu0 0.0
      %777 = vmatpush.msra.mxu0 0.0
      %778 = vmatpush.msra.mxu0 0.0
      %779 = vmatpush.msra.mxu0 0.0
      %780 = vmatpush.msra.mxu0 0.0
      %781 = vmatpush.msra.mxu0 0.0
      %782 = vmatpush.msra.mxu0 0.0
      %783 = vmatpush.msra.mxu0 0.0
      %784 = vmatpush.msra.mxu0 0.0
      %785 = vmatpush.msra.mxu0 0.0
      %786 = vmatpush.msra.mxu0 %v518
      %787 = vmatpush.msra.mxu0 %v517
      %788 = vmatpush.msra.mxu0 %v516
      %789 = vmatpush.msra.mxu0 %v515
      %790 = vmatmul.f32.gmra.mxu0 %v772
      %v791 = vpop.f32.mrf.mxu0
      %v792 = vadd.f32 0.0, %v791
      %793 = vdwg.mxu0
      %795 = vrot.lane.b32.xlu0 %v792, 64
      %v796 = vpop.permute.xlu0 %795
      %v798 = vadd.f32 %v719, %v796
      %v799 = vtanh.pop %v798
      %v800 = vmul.f32 %v721, %v764
      %801 = vrot.lane.b32.xlu0 %v713, 64
      %v802 = vpop.permute.xlu0 %801
      %v804 = vsub.f32 %v799, %v802
      %806 = vrot.lane.b32.xlu0 %v804, 64
      %v807 = vpop.permute.xlu0 %806
      %v809 = vmul.f32 %v800, %v807
      %v810 = vadd.f32 %v713, %v809
      %s811 = scalar_lea.vmem %s443, %s717
      %812 = vst.msk [vmem:[%s811] sm:$0xf] %vm617, %v810
      %s813 = smul.u32 %s21, 4294967293
      %s814 = sadd.s32 %s813, 3
      %s815 = smul.u32 %s814, 4
      %s816 = scalar_lea.vmem [#allocation3], %s815
      %v817 = vld [vmem:[%s816] sm:$0xf]
      %s818 = scalar_lea.vmem [#allocation4], %s815
      %v819 = vld [vmem:[%s818] sm:$0xf]
      %v821 = vsel %vm508, %v810, 0
      %823 = vmatpush.msra.mxu0 0.0
      %824 = vmatpush.msra.mxu0 0.0
      %825 = vmatpush.msra.mxu0 0.0
      %826 = vmatpush.msra.mxu0 0.0
      %827 = vmatpush.msra.mxu0 0.0
      %828 = vmatpush.msra.mxu0 0.0
      %829 = vmatpush.msra.mxu0 0.0
      %830 = vmatpush.msra.mxu0 0.0
      %831 = vmatpush.msra.mxu0 0.0
      %832 = vmatpush.msra.mxu0 0.0
      %833 = vmatpush.msra.mxu0 0.0
      %834 = vmatpush.msra.mxu0 0.0
      %835 = vmatpush.msra.mxu0 %v514
      %836 = vmatpush.msra.mxu0 %v513
      %837 = vmatpush.msra.mxu0 %v512
      %838 = vmatpush.msra.mxu0 %v511
      %839 = vmatmul.f32.gmra.mxu0 %v821
      %v840 = vpop.f32.mrf.mxu0
      %v841 = vadd.f32 0.0, %v840
      %842 = vdwg.mxu0
      %v843 = vadd.f32 %v817, %v841
      %v844 = vxor.u32 %v843, 2147483648
      %v845 = vmul.f32 %v844, 1.442695
      %v846 = vpow.pop %v845
      %v847 = vadd.f32 %v846, 1.0
      %v848 = vrcp.pop %v847
      %v849 = vmul.f32 %v847, %v848
      %v850 = vsub.f32 1.0, %v849
      %v851 = vmul.f32 %v848, %v850
      %v852 = vadd.f32 %v848, %v851
      %vm853 = vweird.f32 %v847
      %vm854 = vweird.f32 %v848
      %vm855 = vmor %vm853, %vm854
      %v856 = vsel %vm855, %v848, %v852
      %v857 = vand.u32 2147483647, %v847
      %vm858 = vcmp.eq.f32.partialorder %v857, 8.507059e+37
      %v859 = vand.u32 %v847, 2147483648
      %v860 = vor.u32 1.1754944e-38, %v859
      %v861 = vsel %vm858, %v860, %v856
      %v862 = vmul.f32 1.0, %v861
      %863 = vrot.lane.b32.xlu0 %v810, 32
      %v864 = vpop.permute.xlu0 %863
      %v866 = vmul.f32 %v862, %v864
      %868 = vrot.lane.b32.xlu0 %v866, 96
      %v869 = vpop.permute.xlu0 %868
      %v870 = vsel %vm508, %v869, 0
      %872 = vmatpush.msra.mxu0 0.0
      %873 = vmatpush.msra.mxu0 0.0
      %874 = vmatpush.msra.mxu0 0.0
      %875 = vmatpush.msra.mxu0 0.0
      %876 = vmatpush.msra.mxu0 0.0
      %877 = vmatpush.msra.mxu0 0.0
      %878 = vmatpush.msra.mxu0 0.0
      %879 = vmatpush.msra.mxu0 0.0
      %880 = vmatpush.msra.mxu0 0.0
      %881 = vmatpush.msra.mxu0 0.0
      %882 = vmatpush.msra.mxu0 0.0
      %883 = vmatpush.msra.mxu0 0.0
      %884 = vmatpush.msra.mxu0 %v518
      %885 = vmatpush.msra.mxu0 %v517
      %886 = vmatpush.msra.mxu0 %v516
      %887 = vmatpush.msra.mxu0 %v515
      %888 = vmatmul.f32.gmra.mxu0 %v870
      %v889 = vpop.f32.mrf.mxu0
      %v890 = vadd.f32 0.0, %v889
      %891 = vdwg.mxu0
      %893 = vrot.lane.b32.xlu0 %v890, 64
      %v894 = vpop.permute.xlu0 %893
      %v896 = vadd.f32 %v817, %v894
      %v897 = vtanh.pop %v896
      %v898 = vmul.f32 %v819, %v862
      %899 = vrot.lane.b32.xlu0 %v810, 64
      %v900 = vpop.permute.xlu0 %899
      %v902 = vsub.f32 %v897, %v900
      %904 = vrot.lane.b32.xlu0 %v902, 64
      %v905 = vpop.permute.xlu0 %904
      %v907 = vmul.f32 %v898, %v905
      %v908 = vadd.f32 %v810, %v907
      %s909 = scalar_lea.vmem %s443, %s815
      %910 = vst.msk [vmem:[%s909] sm:$0xf] %vm617, %v908
      %911 = vst.msk [vmem:[#allocation2] sm:$0xf] %vm617, %v908
      %s912 = smul.u32 %s22, 2
      %s913 = ssub.s32 2, %s912
      %s914 = smul.u32 %s21, %s913
      %s915 = sadd.s32 %s22, %s914
      %s916 = smul.u32 4, %s915
      %p917 = scmp.lt.s32.totalorder %s21, 1
      %s918 = scalar_select %p917, %s21, 1
      %p919 = scmp.lt.s32.totalorder %s916, 11
      %s920 = scalar_select %p919, %s916, 11
      %s921 = smul.addr %s918, 12
      %s922 = sadd.s32 %s920, %s921
      %s923 = smul.addr %s922, 4
      %s924 = scalar_lea.vmem %s6, %s923
      // Predicated region
      $region49: #{encoder_forward.1} parent=43 // pred_check
        %p925 = pneg %p229
      $region50: #{encoder_forward.1} parent=43 // pred_check_branch
        %927 = sbr.rel (%p925) target = $region52
      $region51: #{encoder_forward.1} parent=43 // pred_region
        %s928 = smul.u32 %s22, 2
        %s929 = ssub.s32 2, %s928
        %s930 = smul.u32 %s21, %s929
        %s931 = sadd.s32 %s22, %s930
        %s932 = smul.u32 4, %s931
      $region52: #{encoder_forward.1} parent=43 // pred_fallthru
        _
    $region44: #{encoder_forward.1} parent=5 // pred_fallthru
      _
    %p933 = scmp.le.s32.totalorder 2, %s12
    // Predicated region
    $region53: #{encoder_forward.1} parent=5 // pred_check
      %p934 = pneg %p933
    $region54: #{encoder_forward.1} parent=5 // pred_check_branch
      %936 = sbr.rel (%p934) target = $region56
    $region55: #{encoder_forward.1} parent=5 // pred_region
      %s937 = ssub.s32 %s12, 2
      // Predicated region
      $region57: #{encoder_forward.1} parent=55 // pred_check
        %p938 = pneg %p235
      $region58: #{encoder_forward.1} parent=55 // pred_check_branch
        %940 = sbr.rel (%p938) target = $region60
      $region59: #{encoder_forward.1} parent=55 // pred_region
        %s941 = smul.u32 %s24, 2
        %s942 = ssub.s32 2, %s941
        %s943 = smul.u32 %s23, %s942
        %s944 = sadd.s32 %s24, %s943
        %s945 = smul.u32 4, %s944
        %p946 = scmp.lt.s32.totalorder %s23, 1
        %s947 = scalar_select %p946, %s23, 1
        %p948 = scmp.lt.s32.totalorder %s945, 11
        %s949 = scalar_select %p948, %s945, 11
        %s950 = smul.addr %s947, 12
        %s951 = sadd.s32 %s949, %s950
        %s952 = smul.addr %s951, 4
        %s953 = scalar_lea.vmem %s6, %s952
      $region60: #{encoder_forward.1} parent=55 // pred_fallthru
        _
    $region56: #{encoder_forward.1} parent=5 // pred_fallthru
      _
  $region6: #{encoder_forward.1} parent=0 // loop_footer
    %s16 = sadd.s32 1, %s12
  $region7: #{encoder_forward.1} parent=0 // loop_footer_branch
    %11 = sbr.rel target = $region3
  $region8: #{encoder_forward.1} parent=0 // loop_exit
    _

</llo_original>
